<compile_context>
chip_gen: v7x
topology: tpu7x:2x2x1
jax: 0.10.0
libtpu: 0.0.40
codegen_flags: <defaults>
</compile_context>

<pallas_src>
import jax
import jax.numpy as jnp
import numpy as np
from jax import lax
from jax.experimental import pallas as pl
from jax.experimental.pallas import tpu as pltpu


def _round_up(x, m):
    return (x + m - 1) // m * m


# ----------------------------------------------------------------------------
# Kernel factory: every shape and slab offset is a static Python constant.
# ----------------------------------------------------------------------------
def _make_stid_kernel(c):
    B, H, N, Npad = c['B'], c['H'], c['N'], c['Npad']
    BH, LANE, OUT_LANE = c['BH'], c['LANE'], c['OUT_LANE']
    LXp, NL = c['LXp'], c['NL']
    R = c['off']
    inv_R = 1.0 / (B * N)

    def cross_batch_sum(row):
        """row: [1, LANE].  Returns per-channel totals (summed over batches)
        replicated into every batch's lane block."""
        if B == 1:
            return row
        if BH == LANE:
            # lane width is exactly B*H -> rotations by multiples of H cycle
            # through the batch copies of each channel (XLU slot, ~free).
            tot = row
            for b in range(1, B):
                tot = tot + pltpu.roll(row, shift=b * H, axis=1)
            return tot
        # generic fallback when lanes are zero-padded beyond B*H
        per = row[:, 0:H]
        for b in range(1, B):
            per = per + row[:, b * H:(b + 1) * H]
        pieces = [per] * B
        if LANE > BH:
            pieces.append(jnp.zeros((1, LANE - BH), row.dtype))
        return jnp.concatenate(pieces, axis=-1)

    def kernel(x_ref, w_ref, out_ref):
        f32 = jnp.float32

        # ---- static sub-block views of the packed parameter slab ------------
        adj = w_ref[R['adj']:R['adj'] + Npad, 0:Npad]           # [Npad, Npad]
        wbd = w_ref[R['wbd']:R['wbd'] + LXp, 0:LANE]            # [B(L+T), B*H]
        addm = w_ref[R['add']:R['add'] + Npad, 0:LANE]          # biases + node emb
        gamma = w_ref[R['gb']:R['gb'] + 1, 0:LANE]              # [1, B*H]
        beta = w_ref[R['gb'] + 1:R['gb'] + 2, 0:LANE]           # [1, B*H]

        # ---- GCN + both 1x1-conv embeddings: exactly two MXU ops ------------
        g = jnp.dot(adj, x_ref[...], preferred_element_type=f32)        # [Npad, LXp]
        hidden = jnp.dot(g, wbd, preferred_element_type=f32) + addm     # [Npad, B*H]

        # ---- BatchNorm2d (training-mode batch stats, eps=1e-3), one pass ----
        s1 = cross_batch_sum(jnp.sum(hidden, axis=0, keepdims=True))
        s2 = cross_batch_sum(jnp.sum(hidden * hidden, axis=0, keepdims=True))
        mean = s1 * inv_R
        var = jnp.maximum(s2 * inv_R - mean * mean, 0.0)   # clamp: one-pass var
        scale = gamma * lax.rsqrt(var + 1e-3)
        shift = beta - mean * scale
        hidden = hidden * scale + shift

        # ---- residual MLP encoder (block-diagonal over batch lanes) ---------
        # TODO(synk): nn.Dropout inside the MLP is stochastic in train mode; it
        # is treated as identity (inference semantics) here.
        for i in range(NL):
            w1 = w_ref[R['w1'] + i * LANE:R['w1'] + (i + 1) * LANE, 0:LANE]
            w2 = w_ref[R['w2'] + i * LANE:R['w2'] + (i + 1) * LANE, 0:LANE]
            b1 = w_ref[R['b1'] + i * Npad:R['b1'] + (i + 1) * Npad, 0:LANE]
            b2 = w_ref[R['b2'] + i * Npad:R['b2'] + (i + 1) * Npad, 0:LANE]
            z = jnp.maximum(jnp.dot(hidden, w1, preferred_element_type=f32) + b1, 0.0)
            hidden = hidden + jnp.dot(z, w2, preferred_element_type=f32) + b2

        # ---- regression head + ReLU: lane-dense [Npad, OUT_LANE] store ------
        wreg = w_ref[R['wreg']:R['wreg'] + LANE, 0:OUT_LANE]
        breg = w_ref[R['breg']:R['breg'] + Npad, 0:OUT_LANE]
        pred = jnp.dot(hidden, wreg, preferred_element_type=f32) + breg
        out_ref[...] = jnp.maximum(pred, 0.0)

    return kernel


# ----------------------------------------------------------------------------
# Wrapper: layout plumbing (block-diag packing, conv folding) + pallas_call
# ----------------------------------------------------------------------------
def stid_forward(history_data, history_data_2, p):
    """history_data: [B, input_len, N, 1]; history_data_2: [B, t_i_d_len, N, 1]
    (PyTorch NCHW conv layout).  Returns [B, output_len, N, 1]."""
    f32 = jnp.float32
    B, L, N, _ = history_data.shape
    T = history_data_2.shape[1]
    E = p['w_ts'].shape[0]          # embed_dim
    D = p['w_tid2'].shape[0]        # temp_dim_tid
    ND = p['node_emb'].shape[1]     # node_dim
    O = p['w_reg'].shape[0]         # output_len
    NL = p['enc_w1'].shape[0]       # num_layer
    H = E + D + ND                  # hidden_dim
    BH = B * H                      # lane-packed hidden width (128 for demo cfg)
    Npad = _round_up(N, 8)
    LX = B * (L + T)
    LXp = _round_up(LX, 8)
    LANE = _round_up(BH, 128)       # hidden lane width
    OUT_LANE = _round_up(max(B * O, 1), 128)
    SLANE = max(LANE, OUT_LANE)     # parameter-slab lane width

    # ---- activation: lane-pack both inputs and all batches -------------------
    #   x[n, b*L + l]            = history_data[b, l, n, 0]
    #   x[n, B*L + b*T + t]      = history_data_2[b, t, n, 0]
    x1 = jnp.transpose(history_data[..., 0], (2, 0, 1)).reshape(N, B * L)
    x2 = jnp.transpose(history_data_2[..., 0], (2, 0, 1)).reshape(N, B * T)
    x = jnp.concatenate([x1, x2], axis=1).astype(f32)               # [N, LX]
    x = jnp.pad(x, ((0, Npad - N), (0, LXp - LX)))                  # [Npad, LXp]

    # ---- fold the two chained time-in-day 1x1 convs into one matmul ----------
    w_tid = (p['w_tid1'].T @ p['w_tid2'].T).astype(f32)             # [T, D]
    b_tid = (p['b_tid1'] @ p['w_tid2'].T + p['b_tid2']).astype(f32)  # [D]

    # ---- block-diagonal projection matrix [B*(L+T), B*H] ---------------------
    w_ts_t = jnp.asarray(p['w_ts'], f32).T                          # [L, E]
    wbd = jnp.zeros((LXp, LANE), f32)
    for b in range(B):
        wbd = wbd.at[b * L:(b + 1) * L, b * H:b * H + E].set(w_ts_t)
        wbd = wbd.at[B * L + b * T:B * L + (b + 1) * T,
                     b * H + E:b * H + E + D].set(w_tid)

    # ---- additive slab: projection biases + node embedding, pre-broadcast ----
    add_one = jnp.concatenate(
        [jnp.broadcast_to(jnp.asarray(p['b_ts'], f32), (N, E)),
         jnp.broadcast_to(b_tid, (N, D)),
         jnp.asarray(p['node_emb'], f32)], axis=1)                  # [N, H]
    addm = jnp.pad(jnp.tile(add_one, (1, B)),
                   ((0, Npad - N), (0, LANE - BH)))                 # [Npad, LANE]

    # ---- BN affine rows (zero lane-padding -> padded channels stay zero) -----
    gamma = jnp.pad(jnp.tile(jnp.asarray(p['bn_gamma'], f32), B), (0, LANE - BH))
    beta = jnp.pad(jnp.tile(jnp.asarray(p['bn_beta'], f32), B), (0, LANE - BH))
    gb = jnp.zeros((8, LANE), f32).at[0].set(gamma).at[1].set(beta)

    # ---- block-diagonal encoder weights + pre-broadcast biases ---------------
    eyeB = jnp.eye(B, dtype=f32)

    def _bd(m):     # [H, H] conv weight -> [LANE, LANE] block-diag of m.T
        blk = jnp.kron(eyeB, jnp.asarray(m, f32).T)                 # [BH, BH]
        return jnp.pad(blk, ((0, LANE - BH), (0, LANE - BH)))

    def _brow(v):   # [H] bias -> [Npad, LANE] pre-broadcast, batch-tiled
        row = jnp.pad(jnp.tile(jnp.asarray(v, f32), B), (0, LANE - BH))
        return jnp.broadcast_to(row, (Npad, LANE))

    enc_w1 = jnp.concatenate([_bd(p['enc_w1'][i]) for i in range(NL)], axis=0)
    enc_w2 = jnp.concatenate([_bd(p['enc_w2'][i]) for i in range(NL)], axis=0)
    enc_b1 = jnp.concatenate([_brow(p['enc_b1'][i]) for i in range(NL)], axis=0)
    enc_b2 = jnp.concatenate([_brow(p['enc_b2'][i]) for i in range(NL)], axis=0)

    # ---- block-diagonal regression head (lane-dense output) ------------------
    wreg = jnp.pad(jnp.kron(eyeB, jnp.asarray(p['w_reg'], f32).T),
                   ((0, LANE - BH), (0, OUT_LANE - B * O)))         # [LANE, OUT_LANE]
    breg = jnp.broadcast_to(
        jnp.pad(jnp.tile(jnp.asarray(p['b_reg'], f32), B), (0, OUT_LANE - B * O)),
        (Npad, OUT_LANE))

    # ---- GCN adjacency (zero row/col padding keeps padded rows exactly 0) ----
    adj = jnp.pad(jnp.asarray(p['adj'], f32), ((0, Npad - N), (0, Npad - N)))

    # ---- pack everything into ONE 128-lane slab (every block 8-row aligned) --
    def _pad_lanes(m):
        return jnp.pad(m, ((0, 0), (0, SLANE - m.shape[1])))

    blocks = [('adj', _pad_lanes(adj)), ('wbd', _pad_lanes(wbd)),
              ('add', _pad_lanes(addm)), ('gb', _pad_lanes(gb)),
              ('w1', _pad_lanes(enc_w1)), ('w2', _pad_lanes(enc_w2)),
              ('b1', _pad_lanes(enc_b1)), ('b2', _pad_lanes(enc_b2)),
              ('wreg', _pad_lanes(wreg)), ('breg', _pad_lanes(breg))]
    off, rows, row = {}, [], 0
    for name, blk in blocks:
        off[name] = row
        rows.append(blk)
        row += blk.shape[0]
    w_slab = jnp.concatenate(rows, axis=0)                          # [rows, SLANE]

    cfg = dict(B=B, H=H, N=N, Npad=Npad, BH=BH, LANE=LANE, OUT_LANE=OUT_LANE,
               LXp=LXp, NL=NL, off=off)
    kernel = _make_stid_kernel(cfg)

    flops = 2 * Npad * (Npad * LXp + LXp * LANE
                        + NL * 2 * LANE * LANE + LANE * OUT_LANE)
    bytes_accessed = 4 * (x.size + w_slab.size + Npad * OUT_LANE)

    vmem = pl.BlockSpec(memory_space=pltpu.MemorySpace.VMEM)
    out = pl.pallas_call(
        kernel,
        out_shape=jax.ShapeDtypeStruct((Npad, OUT_LANE), f32),
        in_specs=[vmem, vmem],
        out_specs=vmem,
        cost_estimate=pl.CostEstimate(flops=flops, transcendentals=LANE,
                                      bytes_accessed=bytes_accessed),
    )(x, w_slab)

    # back to PyTorch output layout [B, output_len, N, 1]
    pred = out[:N, :B * O].reshape(N, B, O)
    return jnp.transpose(pred, (1, 2, 0))[..., None]


# ----------------------------------------------------------------------------
# Pure-JAX reference (mirrors the PyTorch forward, un-folded convs)
# ----------------------------------------------------------------------------
def stid_reference(history_data, history_data_2, p):
    hd = jnp.einsum('ijkl,mk->ijml', history_data, p['adj'])
    hd2 = jnp.einsum('ijkl,mk->ijml', history_data_2, p['adj'])

    def conv1x1(x, w, b):  # x: [B, Cin, N, 1], w: [Cout, Cin], b: [Cout]
        return jnp.einsum('bcnw,oc->bonw', x, w) + b[None, :, None, None]

    ts = conv1x1(hd[..., 0:1], p['w_ts'], p['b_ts'])
    t1 = conv1x1(hd2, p['w_tid1'], p['b_tid1'])
    tid = conv1x1(t1, p['w_tid2'], p['b_tid2'])
    B = hd.shape[0]
    node = jnp.broadcast_to(p['node_emb'].T[None, :, :, None],
                            (B,) + p['node_emb'].T.shape + (1,))
    hidden = jnp.concatenate([ts, tid, node], axis=1)                # [B, H, N, 1]

    # training-mode BatchNorm2d with biased variance, eps=1e-3
    mean = jnp.mean(hidden, axis=(0, 2, 3), keepdims=True)
    var = jnp.mean((hidden - mean) ** 2, axis=(0, 2, 3), keepdims=True)
    hidden = (hidden - mean) / jnp.sqrt(var + 0.001)
    hidden = hidden * p['bn_gamma'][None, :, None, None] + p['bn_beta'][None, :, None, None]

    for i in range(p['enc_w1'].shape[0]):
        z = jax.nn.relu(conv1x1(hidden, p['enc_w1'][i], p['enc_b1'][i]))
        hidden = hidden + conv1x1(z, p['enc_w2'][i], p['enc_b2'][i])

    return jax.nn.relu(conv1x1(hidden, p['w_reg'], p['b_reg']))      # [B, O, N, 1]


# ----------------------------------------------------------------------------
if __name__ == "__main__":
    # Small, deterministic configuration consistent with the module __init__.
    B = 2
    input_len = 8          # model_args['input_len']
    t_i_d_len = 8          # model_args['t_i_d_len']
    num_nodes = 16         # model_args['num_nodes']
    embed_dim = 32         # model_args['embed_dim']
    node_dim = 16          # model_args['node_dim']
    temp_dim_tid = 16      # model_args['temp_dim_tid']
    output_len = 8         # model_args['output_len']
    num_layer = 2          # model_args['num_layer']
    hidden_dim = embed_dim + node_dim + temp_dim_tid   # if_time_series/if_node/if_T_i_D True

    key = jax.random.PRNGKey(0)
    ks = jax.random.split(key, 20)

    params = dict(
        adj=jax.random.normal(ks[0], (num_nodes, num_nodes), jnp.float32) / num_nodes,
        w_ts=0.1 * jax.random.normal(ks[1], (embed_dim, input_len), jnp.float32),
        b_ts=0.05 * jax.random.normal(ks[2], (embed_dim,), jnp.float32),
        w_tid1=0.1 * jax.random.normal(ks[3], (temp_dim_tid, t_i_d_len), jnp.float32),
        b_tid1=0.05 * jax.random.normal(ks[4], (temp_dim_tid,), jnp.float32),
        w_tid2=0.1 * jax.random.normal(ks[5], (temp_dim_tid, temp_dim_tid), jnp.float32),
        b_tid2=0.05 * jax.random.normal(ks[6], (temp_dim_tid,), jnp.float32),
        node_emb=0.1 * jax.random.normal(ks[7], (num_nodes, node_dim), jnp.float32),
        bn_gamma=jnp.ones((hidden_dim,), jnp.float32),
        bn_beta=jnp.zeros((hidden_dim,), jnp.float32),
        enc_w1=0.1 * jax.random.normal(ks[8], (num_layer, hidden_dim, hidden_dim), jnp.float32),
        enc_b1=0.05 * jax.random.normal(ks[9], (num_layer, hidden_dim), jnp.float32),
        enc_w2=0.1 * jax.random.normal(ks[10], (num_layer, hidden_dim, hidden_dim), jnp.float32),
        enc_b2=0.05 * jax.random.normal(ks[11], (num_layer, hidden_dim), jnp.float32),
        w_reg=0.1 * jax.random.normal(ks[12], (output_len, hidden_dim), jnp.float32),
        b_reg=0.05 * jax.random.normal(ks[13], (output_len,), jnp.float32),
    )

    history_data = jax.random.normal(ks[14], (B, input_len, num_nodes, 1), jnp.float32)
    history_data_2 = jax.random.normal(ks[15], (B, t_i_d_len, num_nodes, 1), jnp.float32)

    out = stid_forward(history_data, history_data_2, params)
    jax.block_until_ready(out)

    ref = stid_reference(history_data, history_data_2, params)
    assert out.shape == (B, output_len, num_nodes, 1), out.shape
    np.testing.assert_allclose(np.asarray(out), np.asarray(ref), rtol=1e-3, atol=1e-3)

    print("KERNEL_OK")
</pallas_src>

<mosaic_0001>
module attributes {stable_mosaic.version = 11 : i64} {
  func.func @kernel(%arg0: memref<16x32xf32, #tpu.memory_space<vmem>>, %arg1: memref<792x128xf32, #tpu.memory_space<vmem>>, %arg2: memref<16x128xf32, #tpu.memory_space<vmem>>) attributes {dimension_semantics = [], scalar_prefetch = 0 : i64, scratch_operands = 0 : i64, tpu.core_type = #tpu.core_type<tc>} {
    %c0 = arith.constant 0 : index
    %c0_0 = arith.constant 0 : index
    %0 = vector.load %arg1[%c0, %c0_0] : memref<792x128xf32, #tpu.memory_space<vmem>>, vector<16x16xf32>
    %c16 = arith.constant 16 : index
    %c0_1 = arith.constant 0 : index
    %1 = vector.load %arg1[%c16, %c0_1] : memref<792x128xf32, #tpu.memory_space<vmem>>, vector<32x128xf32>
    %c48 = arith.constant 48 : index
    %c0_2 = arith.constant 0 : index
    %2 = vector.load %arg1[%c48, %c0_2] : memref<792x128xf32, #tpu.memory_space<vmem>>, vector<16x128xf32>
    %c64 = arith.constant 64 : index
    %c0_3 = arith.constant 0 : index
    %3 = vector.load %arg1[%c64, %c0_3] : memref<792x128xf32, #tpu.memory_space<vmem>>, vector<1x128xf32>
    %c65 = arith.constant 65 : index
    %c0_4 = arith.constant 0 : index
    %4 = vector.load %arg1[%c65, %c0_4] : memref<792x128xf32, #tpu.memory_space<vmem>>, vector<1x128xf32>
    %c0_5 = arith.constant 0 : index
    %c0_6 = arith.constant 0 : index
    %5 = vector.load %arg0[%c0_5, %c0_6] : memref<16x32xf32, #tpu.memory_space<vmem>>, vector<16x32xf32>
    %cst = arith.constant dense<0.000000e+00> : vector<16x32xf32>
    %6 = tpu.matmul %0, %5, %cst {dimension_numbers = #tpu.dot_dimension_numbers<[1], [0], [0], [1], [0, 0, 1, 1], [], []>} : vector<16x16xf32>, vector<16x32xf32>, vector<16x32xf32> -> vector<16x32xf32>
    %cst_7 = arith.constant dense<0.000000e+00> : vector<16x128xf32>
    %7 = tpu.matmul %6, %1, %cst_7 {dimension_numbers = #tpu.dot_dimension_numbers<[1], [0], [0], [1], [0, 0, 1, 1], [], []>} : vector<16x32xf32>, vector<32x128xf32>, vector<16x128xf32> -> vector<16x128xf32>
    %8 = arith.addf %7, %2 : vector<16x128xf32>
    %cst_8 = arith.constant dense<0.000000e+00> : vector<128xf32>
    %9 = vector.multi_reduction <add>, %8, %cst_8 [0] : vector<16x128xf32> to vector<128xf32>
    %10 = vector.shape_cast %9 : vector<128xf32> to vector<1x128xf32>
    %c64_i32 = arith.constant 64 : i32
    %11 = tpu.dynamic_rotate %10 by %c64_i32 dim 1 : vector<1x128xf32>, i32 -> vector<1x128xf32>
    %12 = arith.addf %10, %11 : vector<1x128xf32>
    %13 = arith.mulf %8, %8 : vector<16x128xf32>
    %cst_9 = arith.constant dense<0.000000e+00> : vector<128xf32>
    %14 = vector.multi_reduction <add>, %13, %cst_9 [0] : vector<16x128xf32> to vector<128xf32>
    %15 = vector.shape_cast %14 : vector<128xf32> to vector<1x128xf32>
    %c64_i32_10 = arith.constant 64 : i32
    %16 = tpu.dynamic_rotate %15 by %c64_i32_10 dim 1 : vector<1x128xf32>, i32 -> vector<1x128xf32>
    %17 = arith.addf %15, %16 : vector<1x128xf32>
    %cst_11 = arith.constant 3.125000e-02 : f32
    %18 = vector.broadcast %cst_11 : f32 to vector<1x128xf32>
    %19 = arith.mulf %12, %18 : vector<1x128xf32>
    %cst_12 = arith.constant 3.125000e-02 : f32
    %20 = vector.broadcast %cst_12 : f32 to vector<1x128xf32>
    %21 = arith.mulf %17, %20 : vector<1x128xf32>
    %22 = arith.mulf %19, %19 : vector<1x128xf32>
    %23 = arith.subf %21, %22 : vector<1x128xf32>
    %cst_13 = arith.constant 0.000000e+00 : f32
    %24 = vector.broadcast %cst_13 : f32 to vector<1x128xf32>
    %25 = arith.maximumf %23, %24 : vector<1x128xf32>
    %cst_14 = arith.constant 1.000000e-03 : f32
    %26 = vector.broadcast %cst_14 : f32 to vector<1x128xf32>
    %27 = arith.addf %25, %26 : vector<1x128xf32>
    %28 = math.rsqrt %27 : vector<1x128xf32>
    %29 = arith.mulf %3, %28 : vector<1x128xf32>
    %30 = arith.mulf %19, %29 : vector<1x128xf32>
    %31 = arith.subf %4, %30 : vector<1x128xf32>
    %32 = vector.broadcast %29 : vector<1x128xf32> to vector<16x128xf32>
    %33 = arith.mulf %8, %32 : vector<16x128xf32>
    %34 = vector.broadcast %31 : vector<1x128xf32> to vector<16x128xf32>
    %35 = arith.addf %33, %34 : vector<16x128xf32>
    %c72 = arith.constant 72 : index
    %c0_15 = arith.constant 0 : index
    %36 = vector.load %arg1[%c72, %c0_15] : memref<792x128xf32, #tpu.memory_space<vmem>>, vector<128x128xf32>
    %c328 = arith.constant 328 : index
    %c0_16 = arith.constant 0 : index
    %37 = vector.load %arg1[%c328, %c0_16] : memref<792x128xf32, #tpu.memory_space<vmem>>, vector<128x128xf32>
    %c584 = arith.constant 584 : index
    %c0_17 = arith.constant 0 : index
    %38 = vector.load %arg1[%c584, %c0_17] : memref<792x128xf32, #tpu.memory_space<vmem>>, vector<16x128xf32>
    %c616 = arith.constant 616 : index
    %c0_18 = arith.constant 0 : index
    %39 = vector.load %arg1[%c616, %c0_18] : memref<792x128xf32, #tpu.memory_space<vmem>>, vector<16x128xf32>
    %cst_19 = arith.constant dense<0.000000e+00> : vector<16x128xf32>
    %40 = tpu.matmul %35, %36, %cst_19 {dimension_numbers = #tpu.dot_dimension_numbers<[1], [0], [0], [1], [0, 0, 1, 1], [], []>} : vector<16x128xf32>, vector<128x128xf32>, vector<16x128xf32> -> vector<16x128xf32>
    %41 = arith.addf %40, %38 : vector<16x128xf32>
    %cst_20 = arith.constant 0.000000e+00 : f32
    %42 = vector.broadcast %cst_20 : f32 to vector<16x128xf32>
    %43 = arith.maximumf %41, %42 : vector<16x128xf32>
    %cst_21 = arith.constant dense<0.000000e+00> : vector<16x128xf32>
    %44 = tpu.matmul %43, %37, %cst_21 {dimension_numbers = #tpu.dot_dimension_numbers<[1], [0], [0], [1], [0, 0, 1, 1], [], []>} : vector<16x128xf32>, vector<128x128xf32>, vector<16x128xf32> -> vector<16x128xf32>
    %45 = arith.addf %35, %44 : vector<16x128xf32>
    %46 = arith.addf %45, %39 : vector<16x128xf32>
    %c200 = arith.constant 200 : index
    %c0_22 = arith.constant 0 : index
    %47 = vector.load %arg1[%c200, %c0_22] : memref<792x128xf32, #tpu.memory_space<vmem>>, vector<128x128xf32>
    %c456 = arith.constant 456 : index
    %c0_23 = arith.constant 0 : index
    %48 = vector.load %arg1[%c456, %c0_23] : memref<792x128xf32, #tpu.memory_space<vmem>>, vector<128x128xf32>
    %c600 = arith.constant 600 : index
    %c0_24 = arith.constant 0 : index
    %49 = vector.load %arg1[%c600, %c0_24] : memref<792x128xf32, #tpu.memory_space<vmem>>, vector<16x128xf32>
    %c632 = arith.constant 632 : index
    %c0_25 = arith.constant 0 : index
    %50 = vector.load %arg1[%c632, %c0_25] : memref<792x128xf32, #tpu.memory_space<vmem>>, vector<16x128xf32>
    %cst_26 = arith.constant dense<0.000000e+00> : vector<16x128xf32>
    %51 = tpu.matmul %46, %47, %cst_26 {dimension_numbers = #tpu.dot_dimension_numbers<[1], [0], [0], [1], [0, 0, 1, 1], [], []>} : vector<16x128xf32>, vector<128x128xf32>, vector<16x128xf32> -> vector<16x128xf32>
    %52 = arith.addf %51, %49 : vector<16x128xf32>
    %cst_27 = arith.constant 0.000000e+00 : f32
    %53 = vector.broadcast %cst_27 : f32 to vector<16x128xf32>
    %54 = arith.maximumf %52, %53 : vector<16x128xf32>
    %cst_28 = arith.constant dense<0.000000e+00> : vector<16x128xf32>
    %55 = tpu.matmul %54, %48, %cst_28 {dimension_numbers = #tpu.dot_dimension_numbers<[1], [0], [0], [1], [0, 0, 1, 1], [], []>} : vector<16x128xf32>, vector<128x128xf32>, vector<16x128xf32> -> vector<16x128xf32>
    %56 = arith.addf %46, %55 : vector<16x128xf32>
    %57 = arith.addf %56, %50 : vector<16x128xf32>
    %c648 = arith.constant 648 : index
    %c0_29 = arith.constant 0 : index
    %58 = vector.load %arg1[%c648, %c0_29] : memref<792x128xf32, #tpu.memory_space<vmem>>, vector<128x128xf32>
    %c776 = arith.constant 776 : index
    %c0_30 = arith.constant 0 : index
    %59 = vector.load %arg1[%c776, %c0_30] : memref<792x128xf32, #tpu.memory_space<vmem>>, vector<16x128xf32>
    %cst_31 = arith.constant dense<0.000000e+00> : vector<16x128xf32>
    %60 = tpu.matmul %57, %58, %cst_31 {dimension_numbers = #tpu.dot_dimension_numbers<[1], [0], [0], [1], [0, 0, 1, 1], [], []>} : vector<16x128xf32>, vector<128x128xf32>, vector<16x128xf32> -> vector<16x128xf32>
    %61 = arith.addf %60, %59 : vector<16x128xf32>
    %cst_32 = arith.constant 0.000000e+00 : f32
    %62 = vector.broadcast %cst_32 : f32 to vector<16x128xf32>
    %63 = arith.maximumf %61, %62 : vector<16x128xf32>
    %c0_33 = arith.constant 0 : index
    %c0_34 = arith.constant 0 : index
    %64 = vector.load %arg2[%c0_33, %c0_34] : memref<16x128xf32, #tpu.memory_space<vmem>>, vector<16x128xf32>
    tpu.vector_store %arg2[%c0_33, %c0_34], %63 {strides = array<i32>} : memref<16x128xf32, #tpu.memory_space<vmem>>, vector<16x128xf32>,
    return
  }
}

</mosaic_0001>

<llo_original>
// kernel: tpu_custom_call.1
$region0: #{tpu_custom_call.1}
  #allocation0 [shape = 'u32[]', space=smem, size = 0x4, offset = 0x4, fixed_abs, tag = 'smem constant byte address 0x4 - core index']
  #allocation1 [shape = 'u32[144,128]{1,0:T(1,128)}', space=vmem, size = 0x12000, scoped, tag = 'internal scratch']
  %s0 = inlined_call_operand.hbm [shape: f32[16,32], index: 0, kind: input, shape index: {}]
  %s1 = inlined_call_operand.hbm [shape: f32[792,128], index: 1, kind: input, shape index: {}]
  %s2 = inlined_call_operand.hbm [shape: f32[16,128], index: 2, kind: output, shape index: {}]
  %s3 = sld [smem:[#allocation0]]
  $region26: #{tpu_custom_call.1} parent=0
    _
  %s5 = ssub.s32 1, %s3
  %s6 = scalar_select 0, %s5, %s3
  $region1: #{tpu_custom_call.1} parent=0
    #allocation2 [shape = 'u8[8192]{0}', space=vmem, size = 0x2000, scoped, tag = 'input window, operand 0, single buffered']
    #allocation3 [shape = 's32[1]{0}', space=sflag, size = 0x4, scoped, tag = 'scoped memory for tpu_custom_call.1']
    #allocation4 [shape = 's32[1]{0}', space=sflag, size = 0x4, scoped, tag = 'scoped memory for tpu_custom_call.1']
    #allocation5 [shape = 'u8[405504]{0}', space=vmem, size = 0x63000, scoped, tag = 'input window, operand 1, single buffered']
    #allocation6 [shape = 's32[1]{0}', space=sflag, size = 0x4, scoped, tag = 'scoped memory for tpu_custom_call.1']
    #allocation7 [shape = 'u8[8192]{0}', space=vmem, size = 0x2000, scoped, tag = 'output window, operand 0, single buffered']
    %7 = vsyncpa [#allocation3], 0
    %8 = vsyncpa [#allocation6], 0
    %9 = vsyncpa [#allocation4], 0
    // Predicated region
    $region2: #{tpu_custom_call.1} parent=1 // pred_check
      _
    $region3: #{tpu_custom_call.1} parent=1 // pred_check_branch
      %11 = sbr.rel (0) target = $region5
    $region4: #{tpu_custom_call.1} parent=1 // pred_region
      %s13 = ssub.s32 256, 256
      %14 = vsyncadd [#allocation3], %s13
      %s15 = sshll.u32 [#allocation2], 4
      %s16 = int_to_ptr.vmem [resolvable:$true] %s15
      %21 = dma.hbm_to_vmem [thread:$0]  %s0, 256, %s16, [#allocation3], 128, 128, 8
    $region5: #{tpu_custom_call.1} parent=1 // pred_fallthru
      _
    // Predicated region
    $region6: #{tpu_custom_call.1} parent=1 // pred_check
      _
    $region7: #{tpu_custom_call.1} parent=1 // pred_check_branch
      %23 = sbr.rel (0) target = $region9
    $region8: #{tpu_custom_call.1} parent=1 // pred_region
      %s25 = ssub.s32 12672, 12672
      %26 = vsyncadd [#allocation6], %s25
      %s27 = sshll.u32 [#allocation5], 4
      %s28 = int_to_ptr.vmem [resolvable:$true] %s27
      %33 = dma.hbm_to_vmem [thread:$0]  %s1, 12672, %s28, [#allocation6], 128, 128, 8
    $region9: #{tpu_custom_call.1} parent=1 // pred_fallthru
      _
    // Predicated region
    $region10: #{tpu_custom_call.1} parent=1 // pred_check
      _
    $region11: #{tpu_custom_call.1} parent=1 // pred_check_branch
      %35 = sbr.rel (0) target = $region13
    $region12: #{tpu_custom_call.1} parent=1 // pred_region
      %36 = dma.done [#allocation3], 256
    $region13: #{tpu_custom_call.1} parent=1 // pred_fallthru
      _
    // Predicated region
    $region14: #{tpu_custom_call.1} parent=1 // pred_check
      _
    $region15: #{tpu_custom_call.1} parent=1 // pred_check_branch
      %38 = sbr.rel (0) target = $region17
    $region16: #{tpu_custom_call.1} parent=1 // pred_region
      %39 = dma.done [#allocation6], 12672
    $region17: #{tpu_custom_call.1} parent=1 // pred_fallthru
      _
    %v40 = vld [vmem:[#allocation5] sm:$0xff]
    %v41 = vld [vmem:[#allocation5 + $0x8] sm:$0xff]
    %v42 = vld [vmem:[#allocation5 + $0x10] sm:$0xff]
    %v43 = vld [vmem:[#allocation5 + $0x18] sm:$0xff]
    %v44 = vld [vmem:[#allocation5 + $0x20] sm:$0xff]
    %v45 = vld [vmem:[#allocation5 + $0x28] sm:$0xff]
    %v46 = vld [vmem:[#allocation5 + $0x30] sm:$0xff]
    %v47 = vld [vmem:[#allocation5 + $0x38] sm:$0xff]
    %v48 = vld [vmem:[#allocation5 + $0x40] sm:$0x1]
    %v49 = vld [vmem:[#allocation5 + $0x41] sm:$0x1]
    %v50 = vld [vmem:[#allocation2] sm:$0xff]
    %v51 = vld [vmem:[#allocation2 + $0x8] sm:$0xff]
    %vm52 = vcmask 130048
    %v54 = vsel %vm52, %v40, 0
    %v57 = vsel %vm52, %v41, 0
    %59 = vmatprep.subr.mxu0 0.0
    %60 = vmatpush1.msra.mxu0 %v50
    %61 = vmatprep.subr.mxu0 0.0
    %62 = vmatpush1.msra.mxu0 %v51
    %63 = vmatprep.subr.mxu0 0.0
    %64 = vmatpush1.msra.mxu0 0.0
    %65 = vmatprep.subr.mxu0 0.0
    %66 = vmatpush1.msra.mxu0 0.0
    %67 = vmatprep.subr.mxu0 0.0
    %68 = vmatpush1.msra.mxu0 0.0
    %69 = vmatprep.subr.mxu0 0.0
    %70 = vmatpush1.msra.mxu0 0.0
    %71 = vmatprep.subr.mxu0 0.0
    %72 = vmatpush1.msra.mxu0 0.0
    %73 = vmatprep.subr.mxu0 0.0
    %74 = vmatpush1.msra.mxu0 0.0
    %75 = vmatprep.subr.mxu0 0.0
    %76 = vmatpush1.msra.mxu0 0.0
    %77 = vmatprep.subr.mxu0 0.0
    %78 = vmatpush1.msra.mxu0 0.0
    %79 = vmatprep.subr.mxu0 0.0
    %80 = vmatpush1.msra.mxu0 0.0
    %81 = vmatprep.subr.mxu0 0.0
    %82 = vmatpush1.msra.mxu0 0.0
    %83 = vmatprep.subr.mxu0 0.0
    %84 = vmatpush1.msra.mxu0 0.0
    %85 = vmatprep.subr.mxu0 0.0
    %86 = vmatpush1.msra.mxu0 0.0
    %87 = vmatprep.subr.mxu0 0.0
    %88 = vmatpush1.msra.mxu0 0.0
    %89 = vmatprep.subr.mxu0 0.0
    %90 = vmatpush1.msra.mxu0 0.0
    %91 = vmatprep.subr.mxu0 0.0
    %92 = vmatpush1.msra.mxu0 0.0
    %93 = vmatprep.subr.mxu0 0.0
    %94 = vmatpush1.msra.mxu0 0.0
    %95 = vmatprep.subr.mxu0 0.0
    %96 = vmatpush1.msra.mxu0 0.0
    %97 = vmatprep.subr.mxu0 0.0
    %98 = vmatpush1.msra.mxu0 0.0
    %99 = vmatprep.subr.mxu0 0.0
    %100 = vmatpush1.msra.mxu0 0.0
    %101 = vmatprep.subr.mxu0 0.0
    %102 = vmatpush1.msra.mxu0 0.0
    %103 = vmatprep.subr.mxu0 0.0
    %104 = vmatpush1.msra.mxu0 0.0
    %105 = vmatprep.subr.mxu0 0.0
    %106 = vmatpush1.msra.mxu0 0.0
    %107 = vmatprep.subr.mxu0 0.0
    %108 = vmatpush1.msra.mxu0 0.0
    %109 = vmatprep.subr.mxu0 0.0
    %110 = vmatpush1.msra.mxu0 0.0
    %111 = vmatprep.subr.mxu0 0.0
    %112 = vmatpush1.msra.mxu0 0.0
    %113 = vmatprep.subr.mxu0 0.0
    %114 = vmatpush1.msra.mxu0 0.0
    %115 = vmatprep.subr.mxu0 0.0
    %116 = vmatpush1.msra.mxu0 0.0
    %117 = vmatprep.subr.mxu0 0.0
    %118 = vmatpush1.msra.mxu0 0.0
    %119 = vmatprep.subr.mxu0 0.0
    %120 = vmatpush1.msra.mxu0 0.0
    %121 = vmatprep.subr.mxu0 0.0
    %122 = vmatpush1.msra.mxu0 0.0
    %123 = vmatprep.mubr.f32.mxu0 0.0
    %124 = vmatmul.mubr.f32.gmra.mrb[0].mxu0 %v54
    %v125 = vpop.f32.mrb[0].mxu0
    %v126 = vadd.f32 0.0, %v125
    %v127 = vpop.f32.mrb[0].mxu0
    %128 = vmatprep.mubr.f32.mxu0 0.0
    %129 = vmatmul.mubr.f32.gmra.mrb[0].mxu0 %v57
    %v130 = vpop.f32.mrb[0].mxu0
    %v131 = vadd.f32 0.0, %v130
    %v132 = vpop.f32.mrb[0].mxu0
    %133 = vdwg.mxu0
    %vm134 = vcmask 261120
    %v136 = vsel %vm134, %v126, 0
    %v139 = vsel %vm134, %v131, 0
    %141 = vmatprep.subr.mxu0 0.0
    %142 = vmatpush1.msra.mxu0 %v42
    %143 = vmatprep.subr.mxu0 0.0
    %144 = vmatpush1.msra.mxu0 %v43
    %145 = vmatprep.subr.mxu0 0.0
    %146 = vmatpush1.msra.mxu0 %v44
    %147 = vmatprep.subr.mxu0 0.0
    %148 = vmatpush1.msra.mxu0 %v45
    %149 = vmatprep.subr.mxu0 0.0
    %150 = vmatpush1.msra.mxu0 0.0
    %151 = vmatprep.subr.mxu0 0.0
    %152 = vmatpush1.msra.mxu0 0.0
    %153 = vmatprep.subr.mxu0 0.0
    %154 = vmatpush1.msra.mxu0 0.0
    %155 = vmatprep.subr.mxu0 0.0
    %156 = vmatpush1.msra.mxu0 0.0
    %157 = vmatprep.subr.mxu0 0.0
    %158 = vmatpush1.msra.mxu0 0.0
    %159 = vmatprep.subr.mxu0 0.0
    %160 = vmatpush1.msra.mxu0 0.0
    %161 = vmatprep.subr.mxu0 0.0
    %162 = vmatpush1.msra.mxu0 0.0
    %163 = vmatprep.subr.mxu0 0.0
    %164 = vmatpush1.msra.mxu0 0.0
    %165 = vmatprep.subr.mxu0 0.0
    %166 = vmatpush1.msra.mxu0 0.0
    %167 = vmatprep.subr.mxu0 0.0
    %168 = vmatpush1.msra.mxu0 0.0
    %169 = vmatprep.subr.mxu0 0.0
    %170 = vmatpush1.msra.mxu0 0.0
    %171 = vmatprep.subr.mxu0 0.0
    %172 = vmatpush1.msra.mxu0 0.0
    %173 = vmatprep.subr.mxu0 0.0
    %174 = vmatpush1.msra.mxu0 0.0
    %175 = vmatprep.subr.mxu0 0.0
    %176 = vmatpush1.msra.mxu0 0.0
    %177 = vmatprep.subr.mxu0 0.0
    %178 = vmatpush1.msra.mxu0 0.0
    %179 = vmatprep.subr.mxu0 0.0
    %180 = vmatpush1.msra.mxu0 0.0
    %181 = vmatprep.subr.mxu0 0.0
    %182 = vmatpush1.msra.mxu0 0.0
    %183 = vmatprep.subr.mxu0 0.0
    %184 = vmatpush1.msra.mxu0 0.0
    %185 = vmatprep.subr.mxu0 0.0
    %186 = vmatpush1.msra.mxu0 0.0
    %187 = vmatprep.subr.mxu0 0.0
    %188 = vmatpush1.msra.mxu0 0.0
    %189 = vmatprep.subr.mxu0 0.0
    %190 = vmatpush1.msra.mxu0 0.0
    %191 = vmatprep.subr.mxu0 0.0
    %192 = vmatpush1.msra.mxu0 0.0
    %193 = vmatprep.subr.mxu0 0.0
    %194 = vmatpush1.msra.mxu0 0.0
    %195 = vmatprep.subr.mxu0 0.0
    %196 = vmatpush1.msra.mxu0 0.0
    %197 = vmatprep.subr.mxu0 0.0
    %198 = vmatpush1.msra.mxu0 0.0
    %199 = vmatprep.subr.mxu0 0.0
    %200 = vmatpush1.msra.mxu0 0.0
    %201 = vmatprep.subr.mxu0 0.0
    %202 = vmatpush1.msra.mxu0 0.0
    %203 = vmatprep.subr.mxu0 0.0
    %204 = vmatpush1.msra.mxu0 0.0
    %205 = vmatprep.mubr.f32.mxu0 0.0
    %206 = vmatmul.mubr.f32.gmra.mrb[0].mxu0 %v136
    %v207 = vpop.f32.mrb[0].mxu0
    %v208 = vadd.f32 %v46, %v207
    %v209 = vpop.f32.mrb[0].mxu0
    %210 = vmatprep.mubr.f32.mxu0 0.0
    %211 = vmatmul.mubr.f32.gmra.mrb[0].mxu0 %v139
    %v212 = vpop.f32.mrb[0].mxu0
    %v213 = vadd.f32 %v47, %v212
    %v214 = vpop.f32.mrb[0].mxu0
    %215 = vdwg.mxu0
    %v216 = vadd.f32 %v208, %v213
    %v217 = vrot.slane %v216, 4
    %v218 = vadd.f32 %v216, %v217
    %v219 = vrot.slane %v218, 2
    %v220 = vadd.f32 %v218, %v219
    %v221 = vrot.slane %v220, 1
    %v222 = vadd.f32 %v220, %v221
    %223 = vrot.lane.b32.xlu0 %v222, 64
    %v224 = vpop.permute.xlu0 %223
    %v225 = vadd.f32 %v222, %v224
    %v226 = vmul.f32 %v208, %v208
    %v227 = vmul.f32 %v213, %v213
    %v228 = vadd.f32 %v226, %v227
    %v229 = vrot.slane %v228, 4
    %v230 = vadd.f32 %v228, %v229
    %v231 = vrot.slane %v230, 2
    %v232 = vadd.f32 %v230, %v231
    %v233 = vrot.slane %v232, 1
    %v234 = vadd.f32 %v232, %v233
    %235 = vrot.lane.b32.xlu0 %v234, 64
    %v236 = vpop.permute.xlu0 %235
    %v237 = vadd.f32 %v234, %v236
    %v238 = vmul.f32 %v225, 0.03125
    %v239 = vmul.f32 %v237, 0.03125
    %v240 = vmul.f32 %v238, %v238
    %v241 = vsub.f32 %v239, %v240
    %v242 = vmax.f32 %v241, 0.0
    %v243 = vadd.f32 %v242, 0.001
    %v244 = vrsqrt.pop %v243
    %v245 = vmul.f32 %v48, %v244
    %v246 = vmul.f32 %v238, %v245
    %v247 = vsub.f32 %v49, %v246
    %v248 = vlaneseq
    %v249 = vshrl.u32 %v248, 7
    %v250 = vsub.s32 0, %v249
    %v251 = vrot.slane %v245, %v250
    %v252 = vmul.f32 %v208, %v251
    %v253 = vmul.f32 %v213, %v251
    %v254 = vlaneseq
    %v255 = vshrl.u32 %v254, 7
    %v256 = vsub.s32 0, %v255
    %v257 = vrot.slane %v247, %v256
    %v258 = vadd.f32 %v252, %v257
    %v259 = vadd.f32 %v253, %v257
    %v260 = vld [vmem:[#allocation5 + $0x48] sm:$0xff]
    %v261 = vld [vmem:[#allocation5 + $0x50] sm:$0xff]
    %v262 = vld [vmem:[#allocation5 + $0x58] sm:$0xff]
    %v263 = vld [vmem:[#allocation5 + $0x60] sm:$0xff]
    %v264 = vld [vmem:[#allocation5 + $0x68] sm:$0xff]
    %v265 = vld [vmem:[#allocation5 + $0x70] sm:$0xff]
    %v266 = vld [vmem:[#allocation5 + $0x78] sm:$0xff]
    %v267 = vld [vmem:[#allocation5 + $0x80] sm:$0xff]
    %v268 = vld [vmem:[#allocation5 + $0x88] sm:$0xff]
    %v269 = vld [vmem:[#allocation5 + $0x90] sm:$0xff]
    %v270 = vld [vmem:[#allocation5 + $0x98] sm:$0xff]
    %v271 = vld [vmem:[#allocation5 + $0xa0] sm:$0xff]
    %v272 = vld [vmem:[#allocation5 + $0xa8] sm:$0xff]
    %v273 = vld [vmem:[#allocation5 + $0xb0] sm:$0xff]
    %v274 = vld [vmem:[#allocation5 + $0xb8] sm:$0xff]
    %v275 = vld [vmem:[#allocation5 + $0xc0] sm:$0xff]
    %v276 = vld [vmem:[#allocation5 + $0x148] sm:$0xff]
    %v277 = vld [vmem:[#allocation5 + $0x150] sm:$0xff]
    %v278 = vld [vmem:[#allocation5 + $0x158] sm:$0xff]
    %v279 = vld [vmem:[#allocation5 + $0x160] sm:$0xff]
    %v280 = vld [vmem:[#allocation5 + $0x168] sm:$0xff]
    %v281 = vld [vmem:[#allocation5 + $0x170] sm:$0xff]
    %v282 = vld [vmem:[#allocation5 + $0x178] sm:$0xff]
    %v283 = vld [vmem:[#allocation5 + $0x180] sm:$0xff]
    %v284 = vld [vmem:[#allocation5 + $0x188] sm:$0xff]
    %v285 = vld [vmem:[#allocation5 + $0x190] sm:$0xff]
    %v286 = vld [vmem:[#allocation5 + $0x198] sm:$0xff]
    %v287 = vld [vmem:[#allocation5 + $0x1a0] sm:$0xff]
    %v288 = vld [vmem:[#allocation5 + $0x1a8] sm:$0xff]
    %v289 = vld [vmem:[#allocation5 + $0x1b0] sm:$0xff]
    %v290 = vld [vmem:[#allocation5 + $0x1b8] sm:$0xff]
    %v291 = vld [vmem:[#allocation5 + $0x1c0] sm:$0xff]
    %v292 = vld [vmem:[#allocation5 + $0x248] sm:$0xff]
    %v293 = vld [vmem:[#allocation5 + $0x250] sm:$0xff]
    %v294 = vld [vmem:[#allocation5 + $0x268] sm:$0xff]
    %v295 = vld [vmem:[#allocation5 + $0x270] sm:$0xff]
    %296 = vmatprep.subr.mxu0 0.0
    %297 = vmatpush1.msra.mxu0 %v260
    %298 = vmatprep.subr.mxu0 0.0
    %299 = vmatpush1.msra.mxu0 %v261
    %300 = vmatprep.subr.mxu0 0.0
    %301 = vmatpush1.msra.mxu0 %v262
    %302 = vmatprep.subr.mxu0 0.0
    %303 = vmatpush1.msra.mxu0 %v263
    %304 = vmatprep.subr.mxu0 0.0
    %305 = vmatpush1.msra.mxu0 %v264
    %306 = vmatprep.subr.mxu0 0.0
    %307 = vmatpush1.msra.mxu0 %v265
    %308 = vmatprep.subr.mxu0 0.0
    %309 = vmatpush1.msra.mxu0 %v266
    %310 = vmatprep.subr.mxu0 0.0
    %311 = vmatpush1.msra.mxu0 %v267
    %312 = vmatprep.subr.mxu0 0.0
    %313 = vmatpush1.msra.mxu0 %v268
    %314 = vmatprep.subr.mxu0 0.0
    %315 = vmatpush1.msra.mxu0 %v269
    %316 = vmatprep.subr.mxu0 0.0
    %317 = vmatpush1.msra.mxu0 %v270
    %318 = vmatprep.subr.mxu0 0.0
    %319 = vmatpush1.msra.mxu0 %v271
    %320 = vmatprep.subr.mxu0 0.0
    %321 = vmatpush1.msra.mxu0 %v272
    %322 = vmatprep.subr.mxu0 0.0
    %323 = vmatpush1.msra.mxu0 %v273
    %324 = vmatprep.subr.mxu0 0.0
    %325 = vmatpush1.msra.mxu0 %v274
    %326 = vmatprep.subr.mxu0 0.0
    %327 = vmatpush1.msra.mxu0 %v275
    %328 = vmatprep.subr.mxu0 0.0
    %329 = vmatpush1.msra.mxu0 0.0
    %330 = vmatprep.subr.mxu0 0.0
    %331 = vmatpush1.msra.mxu0 0.0
    %332 = vmatprep.subr.mxu0 0.0
    %333 = vmatpush1.msra.mxu0 0.0
    %334 = vmatprep.subr.mxu0 0.0
    %335 = vmatpush1.msra.mxu0 0.0
    %336 = vmatprep.subr.mxu0 0.0
    %337 = vmatpush1.msra.mxu0 0.0
    %338 = vmatprep.subr.mxu0 0.0
    %339 = vmatpush1.msra.mxu0 0.0
    %340 = vmatprep.subr.mxu0 0.0
    %341 = vmatpush1.msra.mxu0 0.0
    %342 = vmatprep.subr.mxu0 0.0
    %343 = vmatpush1.msra.mxu0 0.0
    %344 = vmatprep.subr.mxu0 0.0
    %345 = vmatpush1.msra.mxu0 0.0
    %346 = vmatprep.subr.mxu0 0.0
    %347 = vmatpush1.msra.mxu0 0.0
    %348 = vmatprep.subr.mxu0 0.0
    %349 = vmatpush1.msra.mxu0 0.0
    %350 = vmatprep.subr.mxu0 0.0
    %351 = vmatpush1.msra.mxu0 0.0
    %352 = vmatprep.subr.mxu0 0.0
    %353 = vmatpush1.msra.mxu0 0.0
    %354 = vmatprep.subr.mxu0 0.0
    %355 = vmatpush1.msra.mxu0 0.0
    %356 = vmatprep.subr.mxu0 0.0
    %357 = vmatpush1.msra.mxu0 0.0
    %358 = vmatprep.subr.mxu0 0.0
    %359 = vmatpush1.msra.mxu0 0.0
    %360 = vmatprep.mubr.f32.mxu0 0.0
    %361 = vmatmul.mubr.f32.gmra.mrb[0].mxu0 %v258
    %v362 = vpop.f32.mrb[0].mxu0
    %v363 = vadd.f32 %v292, %v362
    %v364 = vpop.f32.mrb[0].mxu0
    %365 = vmatprep.mubr.f32.mxu0 0.0
    %366 = vmatmul.mubr.f32.gmra.mrb[0].mxu0 %v259
    %v367 = vpop.f32.mrb[0].mxu0
    %v368 = vadd.f32 %v293, %v367
    %v369 = vpop.f32.mrb[0].mxu0
    %370 = vdwg.mxu0
    %v371 = vmax.f32 %v363, 0.0
    %v372 = vmax.f32 %v368, 0.0
    %373 = vmatprep.subr.mxu0 0.0
    %374 = vmatpush1.msra.mxu0 %v276
    %375 = vmatprep.subr.mxu0 0.0
    %376 = vmatpush1.msra.mxu0 %v277
    %377 = vmatprep.subr.mxu0 0.0
    %378 = vmatpush1.msra.mxu0 %v278
    %379 = vmatprep.subr.mxu0 0.0
    %380 = vmatpush1.msra.mxu0 %v279
    %381 = vmatprep.subr.mxu0 0.0
    %382 = vmatpush1.msra.mxu0 %v280
    %383 = vmatprep.subr.mxu0 0.0
    %384 = vmatpush1.msra.mxu0 %v281
    %385 = vmatprep.subr.mxu0 0.0
    %386 = vmatpush1.msra.mxu0 %v282
    %387 = vmatprep.subr.mxu0 0.0
    %388 = vmatpush1.msra.mxu0 %v283
    %389 = vmatprep.subr.mxu0 0.0
    %390 = vmatpush1.msra.mxu0 %v284
    %391 = vmatprep.subr.mxu0 0.0
    %392 = vmatpush1.msra.mxu0 %v285
    %393 = vmatprep.subr.mxu0 0.0
    %394 = vmatpush1.msra.mxu0 %v286
    %395 = vmatprep.subr.mxu0 0.0
    %396 = vmatpush1.msra.mxu0 %v287
    %397 = vmatprep.subr.mxu0 0.0
    %398 = vmatpush1.msra.mxu0 %v288
    %399 = vmatprep.subr.mxu0 0.0
    %400 = vmatpush1.msra.mxu0 %v289
    %401 = vmatprep.subr.mxu0 0.0
    %402 = vmatpush1.msra.mxu0 %v290
    %403 = vmatprep.subr.mxu0 0.0
    %404 = vmatpush1.msra.mxu0 %v291
    %405 = vmatprep.subr.mxu0 0.0
    %406 = vmatpush1.msra.mxu0 0.0
    %407 = vmatprep.subr.mxu0 0.0
    %408 = vmatpush1.msra.mxu0 0.0
    %409 = vmatprep.subr.mxu0 0.0
    %410 = vmatpush1.msra.mxu0 0.0
    %411 = vmatprep.subr.mxu0 0.0
    %412 = vmatpush1.msra.mxu0 0.0
    %413 = vmatprep.subr.mxu0 0.0
    %414 = vmatpush1.msra.mxu0 0.0
    %415 = vmatprep.subr.mxu0 0.0
    %416 = vmatpush1.msra.mxu0 0.0
    %417 = vmatprep.subr.mxu0 0.0
    %418 = vmatpush1.msra.mxu0 0.0
    %419 = vmatprep.subr.mxu0 0.0
    %420 = vmatpush1.msra.mxu0 0.0
    %421 = vmatprep.subr.mxu0 0.0
    %422 = vmatpush1.msra.mxu0 0.0
    %423 = vmatprep.subr.mxu0 0.0
    %424 = vmatpush1.msra.mxu0 0.0
    %425 = vmatprep.subr.mxu0 0.0
    %426 = vmatpush1.msra.mxu0 0.0
    %427 = vmatprep.subr.mxu0 0.0
    %428 = vmatpush1.msra.mxu0 0.0
    %429 = vmatprep.subr.mxu0 0.0
    %430 = vmatpush1.msra.mxu0 0.0
    %431 = vmatprep.subr.mxu0 0.0
    %432 = vmatpush1.msra.mxu0 0.0
    %433 = vmatprep.subr.mxu0 0.0
    %434 = vmatpush1.msra.mxu0 0.0
    %435 = vmatprep.subr.mxu0 0.0
    %436 = vmatpush1.msra.mxu0 0.0
    %437 = vmatprep.mubr.f32.mxu0 0.0
    %438 = vmatmul.mubr.f32.gmra.mrb[0].mxu0 %v371
    %v439 = vpop.f32.mrb[0].mxu0
    %v440 = vadd.f32 0.0, %v439
    %v441 = vpop.f32.mrb[0].mxu0
    %442 = vmatprep.mubr.f32.mxu0 0.0
    %443 = vmatmul.mubr.f32.gmra.mrb[0].mxu0 %v372
    %v444 = vpop.f32.mrb[0].mxu0
    %v445 = vadd.f32 0.0, %v444
    %v446 = vpop.f32.mrb[0].mxu0
    %447 = vdwg.mxu0
    %v448 = vadd.f32 %v258, %v440
    %v449 = vadd.f32 %v259, %v445
    %v450 = vadd.f32 %v448, %v294
    %v451 = vadd.f32 %v449, %v295
    %v452 = vld [vmem:[#allocation5 + $0xc8] sm:$0xff]
    %v453 = vld [vmem:[#allocation5 + $0xd0] sm:$0xff]
    %v454 = vld [vmem:[#allocation5 + $0xd8] sm:$0xff]
    %v455 = vld [vmem:[#allocation5 + $0xe0] sm:$0xff]
    %v456 = vld [vmem:[#allocation5 + $0xe8] sm:$0xff]
    %v457 = vld [vmem:[#allocation5 + $0xf0] sm:$0xff]
    %v458 = vld [vmem:[#allocation5 + $0xf8] sm:$0xff]
    %v459 = vld [vmem:[#allocation5 + $0x100] sm:$0xff]
    %v460 = vld [vmem:[#allocation5 + $0x108] sm:$0xff]
    %v461 = vld [vmem:[#allocation5 + $0x110] sm:$0xff]
    %v462 = vld [vmem:[#allocation5 + $0x118] sm:$0xff]
    %v463 = vld [vmem:[#allocation5 + $0x120] sm:$0xff]
    %v464 = vld [vmem:[#allocation5 + $0x128] sm:$0xff]
    %v465 = vld [vmem:[#allocation5 + $0x130] sm:$0xff]
    %v466 = vld [vmem:[#allocation5 + $0x138] sm:$0xff]
    %v467 = vld [vmem:[#allocation5 + $0x140] sm:$0xff]
    %v468 = vld [vmem:[#allocation5 + $0x1c8] sm:$0xff]
    %v469 = vld [vmem:[#allocation5 + $0x1d0] sm:$0xff]
    %v470 = vld [vmem:[#allocation5 + $0x1d8] sm:$0xff]
    %v471 = vld [vmem:[#allocation5 + $0x1e0] sm:$0xff]
    %v472 = vld [vmem:[#allocation5 + $0x1e8] sm:$0xff]
    %v473 = vld [vmem:[#allocation5 + $0x1f0] sm:$0xff]
    %v474 = vld [vmem:[#allocation5 + $0x1f8] sm:$0xff]
    %v475 = vld [vmem:[#allocation5 + $0x200] sm:$0xff]
    %v476 = vld [vmem:[#allocation5 + $0x208] sm:$0xff]
    %v477 = vld [vmem:[#allocation5 + $0x210] sm:$0xff]
    %v478 = vld [vmem:[#allocation5 + $0x218] sm:$0xff]
    %v479 = vld [vmem:[#allocation5 + $0x220] sm:$0xff]
    %v480 = vld [vmem:[#allocation5 + $0x228] sm:$0xff]
    %v481 = vld [vmem:[#allocation5 + $0x230] sm:$0xff]
    %v482 = vld [vmem:[#allocation5 + $0x238] sm:$0xff]
    %v483 = vld [vmem:[#allocation5 + $0x240] sm:$0xff]
    %v484 = vld [vmem:[#allocation5 + $0x258] sm:$0xff]
    %v485 = vld [vmem:[#allocation5 + $0x260] sm:$0xff]
    %v486 = vld [vmem:[#allocation5 + $0x278] sm:$0xff]
    %v487 = vld [vmem:[#allocation5 + $0x280] sm:$0xff]
    %488 = vmatprep.subr.mxu0 0.0
    %489 = vmatpush1.msra.mxu0 %v452
    %490 = vmatprep.subr.mxu0 0.0
    %491 = vmatpush1.msra.mxu0 %v453
    %492 = vmatprep.subr.mxu0 0.0
    %493 = vmatpush1.msra.mxu0 %v454
    %494 = vmatprep.subr.mxu0 0.0
    %495 = vmatpush1.msra.mxu0 %v455
    %496 = vmatprep.subr.mxu0 0.0
    %497 = vmatpush1.msra.mxu0 %v456
    %498 = vmatprep.subr.mxu0 0.0
    %499 = vmatpush1.msra.mxu0 %v457
    %500 = vmatprep.subr.mxu0 0.0
    %501 = vmatpush1.msra.mxu0 %v458
    %502 = vmatprep.subr.mxu0 0.0
    %503 = vmatpush1.msra.mxu0 %v459
    %504 = vmatprep.subr.mxu0 0.0
    %505 = vmatpush1.msra.mxu0 %v460
    %506 = vmatprep.subr.mxu0 0.0
    %507 = vmatpush1.msra.mxu0 %v461
    %508 = vmatprep.subr.mxu0 0.0
    %509 = vmatpush1.msra.mxu0 %v462
    %510 = vmatprep.subr.mxu0 0.0
    %511 = vmatpush1.msra.mxu0 %v463
    %512 = vmatprep.subr.mxu0 0.0
    %513 = vmatpush1.msra.mxu0 %v464
    %514 = vmatprep.subr.mxu0 0.0
    %515 = vmatpush1.msra.mxu0 %v465
    %516 = vmatprep.subr.mxu0 0.0
    %517 = vmatpush1.msra.mxu0 %v466
    %518 = vmatprep.subr.mxu0 0.0
    %519 = vmatpush1.msra.mxu0 %v467
    %520 = vmatprep.subr.mxu0 0.0
    %521 = vmatpush1.msra.mxu0 0.0
    %522 = vmatprep.subr.mxu0 0.0
    %523 = vmatpush1.msra.mxu0 0.0
    %524 = vmatprep.subr.mxu0 0.0
    %525 = vmatpush1.msra.mxu0 0.0
    %526 = vmatprep.subr.mxu0 0.0
    %527 = vmatpush1.msra.mxu0 0.0
    %528 = vmatprep.subr.mxu0 0.0
    %529 = vmatpush1.msra.mxu0 0.0
    %530 = vmatprep.subr.mxu0 0.0
    %531 = vmatpush1.msra.mxu0 0.0
    %532 = vmatprep.subr.mxu0 0.0
    %533 = vmatpush1.msra.mxu0 0.0
    %534 = vmatprep.subr.mxu0 0.0
    %535 = vmatpush1.msra.mxu0 0.0
    %536 = vmatprep.subr.mxu0 0.0
    %537 = vmatpush1.msra.mxu0 0.0
    %538 = vmatprep.subr.mxu0 0.0
    %539 = vmatpush1.msra.mxu0 0.0
    %540 = vmatprep.subr.mxu0 0.0
    %541 = vmatpush1.msra.mxu0 0.0
    %542 = vmatprep.subr.mxu0 0.0
    %543 = vmatpush1.msra.mxu0 0.0
    %544 = vmatprep.subr.mxu0 0.0
    %545 = vmatpush1.msra.mxu0 0.0
    %546 = vmatprep.subr.mxu0 0.0
    %547 = vmatpush1.msra.mxu0 0.0
    %548 = vmatprep.subr.mxu0 0.0
    %549 = vmatpush1.msra.mxu0 0.0
    %550 = vmatprep.subr.mxu0 0.0
    %551 = vmatpush1.msra.mxu0 0.0
    %552 = vmatprep.mubr.f32.mxu0 0.0
    %553 = vmatmul.mubr.f32.gmra.mrb[0].mxu0 %v450
    %v554 = vpop.f32.mrb[0].mxu0
    %v555 = vadd.f32 %v484, %v554
    %v556 = vpop.f32.mrb[0].mxu0
    %557 = vmatprep.mubr.f32.mxu0 0.0
    %558 = vmatmul.mubr.f32.gmra.mrb[0].mxu0 %v451
    %v559 = vpop.f32.mrb[0].mxu0
    %v560 = vadd.f32 %v485, %v559
    %v561 = vpop.f32.mrb[0].mxu0
    %562 = vdwg.mxu0
    %v563 = vmax.f32 %v555, 0.0
    %v564 = vmax.f32 %v560, 0.0
    %565 = vmatprep.subr.mxu0 0.0
    %566 = vmatpush1.msra.mxu0 %v468
    %567 = vmatprep.subr.mxu0 0.0
    %568 = vmatpush1.msra.mxu0 %v469
    %569 = vmatprep.subr.mxu0 0.0
    %570 = vmatpush1.msra.mxu0 %v470
    %571 = vmatprep.subr.mxu0 0.0
    %572 = vmatpush1.msra.mxu0 %v471
    %573 = vmatprep.subr.mxu0 0.0
    %574 = vmatpush1.msra.mxu0 %v472
    %575 = vmatprep.subr.mxu0 0.0
    %576 = vmatpush1.msra.mxu0 %v473
    %577 = vmatprep.subr.mxu0 0.0
    %578 = vmatpush1.msra.mxu0 %v474
    %579 = vmatprep.subr.mxu0 0.0
    %580 = vmatpush1.msra.mxu0 %v475
    %581 = vmatprep.subr.mxu0 0.0
    %582 = vmatpush1.msra.mxu0 %v476
    %583 = vmatprep.subr.mxu0 0.0
    %584 = vmatpush1.msra.mxu0 %v477
    %585 = vmatprep.subr.mxu0 0.0
    %586 = vmatpush1.msra.mxu0 %v478
    %587 = vmatprep.subr.mxu0 0.0
    %588 = vmatpush1.msra.mxu0 %v479
    %589 = vmatprep.subr.mxu0 0.0
    %590 = vmatpush1.msra.mxu0 %v480
    %591 = vmatprep.subr.mxu0 0.0
    %592 = vmatpush1.msra.mxu0 %v481
    %593 = vmatprep.subr.mxu0 0.0
    %594 = vmatpush1.msra.mxu0 %v482
    %595 = vmatprep.subr.mxu0 0.0
    %596 = vmatpush1.msra.mxu0 %v483
    %597 = vmatprep.subr.mxu0 0.0
    %598 = vmatpush1.msra.mxu0 0.0
    %599 = vmatprep.subr.mxu0 0.0
    %600 = vmatpush1.msra.mxu0 0.0
    %601 = vmatprep.subr.mxu0 0.0
    %602 = vmatpush1.msra.mxu0 0.0
    %603 = vmatprep.subr.mxu0 0.0
    %604 = vmatpush1.msra.mxu0 0.0
    %605 = vmatprep.subr.mxu0 0.0
    %606 = vmatpush1.msra.mxu0 0.0
    %607 = vmatprep.subr.mxu0 0.0
    %608 = vmatpush1.msra.mxu0 0.0
    %609 = vmatprep.subr.mxu0 0.0
    %610 = vmatpush1.msra.mxu0 0.0
    %611 = vmatprep.subr.mxu0 0.0
    %612 = vmatpush1.msra.mxu0 0.0
    %613 = vmatprep.subr.mxu0 0.0
    %614 = vmatpush1.msra.mxu0 0.0
    %615 = vmatprep.subr.mxu0 0.0
    %616 = vmatpush1.msra.mxu0 0.0
    %617 = vmatprep.subr.mxu0 0.0
    %618 = vmatpush1.msra.mxu0 0.0
    %619 = vmatprep.subr.mxu0 0.0
    %620 = vmatpush1.msra.mxu0 0.0
    %621 = vmatprep.subr.mxu0 0.0
    %622 = vmatpush1.msra.mxu0 0.0
    %623 = vmatprep.subr.mxu0 0.0
    %624 = vmatpush1.msra.mxu0 0.0
    %625 = vmatprep.subr.mxu0 0.0
    %626 = vmatpush1.msra.mxu0 0.0
    %627 = vmatprep.subr.mxu0 0.0
    %628 = vmatpush1.msra.mxu0 0.0
    %629 = vmatprep.mubr.f32.mxu0 0.0
    %630 = vmatmul.mubr.f32.gmra.mrb[0].mxu0 %v563
    %v631 = vpop.f32.mrb[0].mxu0
    %v632 = vadd.f32 0.0, %v631
    %v633 = vpop.f32.mrb[0].mxu0
    %634 = vmatprep.mubr.f32.mxu0 0.0
    %635 = vmatmul.mubr.f32.gmra.mrb[0].mxu0 %v564
    %v636 = vpop.f32.mrb[0].mxu0
    %v637 = vadd.f32 0.0, %v636
    %v638 = vpop.f32.mrb[0].mxu0
    %639 = vdwg.mxu0
    %v640 = vadd.f32 %v450, %v632
    %v641 = vadd.f32 %v451, %v637
    %v642 = vadd.f32 %v640, %v486
    %v643 = vadd.f32 %v641, %v487
    %v644 = vld [vmem:[#allocation5 + $0x288] sm:$0xff]
    %v645 = vld [vmem:[#allocation5 + $0x290] sm:$0xff]
    %v646 = vld [vmem:[#allocation5 + $0x298] sm:$0xff]
    %v647 = vld [vmem:[#allocation5 + $0x2a0] sm:$0xff]
    %v648 = vld [vmem:[#allocation5 + $0x2a8] sm:$0xff]
    %v649 = vld [vmem:[#allocation5 + $0x2b0] sm:$0xff]
    %v650 = vld [vmem:[#allocation5 + $0x2b8] sm:$0xff]
    %v651 = vld [vmem:[#allocation5 + $0x2c0] sm:$0xff]
    %v652 = vld [vmem:[#allocation5 + $0x2c8] sm:$0xff]
    %v653 = vld [vmem:[#allocation5 + $0x2d0] sm:$0xff]
    %v654 = vld [vmem:[#allocation5 + $0x2d8] sm:$0xff]
    %v655 = vld [vmem:[#allocation5 + $0x2e0] sm:$0xff]
    %v656 = vld [vmem:[#allocation5 + $0x2e8] sm:$0xff]
    %v657 = vld [vmem:[#allocation5 + $0x2f0] sm:$0xff]
    %v658 = vld [vmem:[#allocation5 + $0x2f8] sm:$0xff]
    %v659 = vld [vmem:[#allocation5 + $0x300] sm:$0xff]
    %v660 = vld [vmem:[#allocation5 + $0x308] sm:$0xff]
    %v661 = vld [vmem:[#allocation5 + $0x310] sm:$0xff]
    %662 = vmatprep.subr.mxu0 0.0
    %663 = vmatpush1.msra.mxu0 %v644
    %664 = vmatprep.subr.mxu0 0.0
    %665 = vmatpush1.msra.mxu0 %v645
    %666 = vmatprep.subr.mxu0 0.0
    %667 = vmatpush1.msra.mxu0 %v646
    %668 = vmatprep.subr.mxu0 0.0
    %669 = vmatpush1.msra.mxu0 %v647
    %670 = vmatprep.subr.mxu0 0.0
    %671 = vmatpush1.msra.mxu0 %v648
    %672 = vmatprep.subr.mxu0 0.0
    %673 = vmatpush1.msra.mxu0 %v649
    %674 = vmatprep.subr.mxu0 0.0
    %675 = vmatpush1.msra.mxu0 %v650
    %676 = vmatprep.subr.mxu0 0.0
    %677 = vmatpush1.msra.mxu0 %v651
    %678 = vmatprep.subr.mxu0 0.0
    %679 = vmatpush1.msra.mxu0 %v652
    %680 = vmatprep.subr.mxu0 0.0
    %681 = vmatpush1.msra.mxu0 %v653
    %682 = vmatprep.subr.mxu0 0.0
    %683 = vmatpush1.msra.mxu0 %v654
    %684 = vmatprep.subr.mxu0 0.0
    %685 = vmatpush1.msra.mxu0 %v655
    %686 = vmatprep.subr.mxu0 0.0
    %687 = vmatpush1.msra.mxu0 %v656
    %688 = vmatprep.subr.mxu0 0.0
    %689 = vmatpush1.msra.mxu0 %v657
    %690 = vmatprep.subr.mxu0 0.0
    %691 = vmatpush1.msra.mxu0 %v658
    %692 = vmatprep.subr.mxu0 0.0
    %693 = vmatpush1.msra.mxu0 %v659
    %694 = vmatprep.subr.mxu0 0.0
    %695 = vmatpush1.msra.mxu0 0.0
    %696 = vmatprep.subr.mxu0 0.0
    %697 = vmatpush1.msra.mxu0 0.0
    %698 = vmatprep.subr.mxu0 0.0
    %699 = vmatpush1.msra.mxu0 0.0
    %700 = vmatprep.subr.mxu0 0.0
    %701 = vmatpush1.msra.mxu0 0.0
    %702 = vmatprep.subr.mxu0 0.0
    %703 = vmatpush1.msra.mxu0 0.0
    %704 = vmatprep.subr.mxu0 0.0
    %705 = vmatpush1.msra.mxu0 0.0
    %706 = vmatprep.subr.mxu0 0.0
    %707 = vmatpush1.msra.mxu0 0.0
    %708 = vmatprep.subr.mxu0 0.0
    %709 = vmatpush1.msra.mxu0 0.0
    %710 = vmatprep.subr.mxu0 0.0
    %711 = vmatpush1.msra.mxu0 0.0
    %712 = vmatprep.subr.mxu0 0.0
    %713 = vmatpush1.msra.mxu0 0.0
    %714 = vmatprep.subr.mxu0 0.0
    %715 = vmatpush1.msra.mxu0 0.0
    %716 = vmatprep.subr.mxu0 0.0
    %717 = vmatpush1.msra.mxu0 0.0
    %718 = vmatprep.subr.mxu0 0.0
    %719 = vmatpush1.msra.mxu0 0.0
    %720 = vmatprep.subr.mxu0 0.0
    %721 = vmatpush1.msra.mxu0 0.0
    %722 = vmatprep.subr.mxu0 0.0
    %723 = vmatpush1.msra.mxu0 0.0
    %724 = vmatprep.subr.mxu0 0.0
    %725 = vmatpush1.msra.mxu0 0.0
    %726 = vmatprep.mubr.f32.mxu0 0.0
    %727 = vmatmul.mubr.f32.gmra.mrb[0].mxu0 %v642
    %v728 = vpop.f32.mrb[0].mxu0
    %v729 = vadd.f32 %v660, %v728
    %v730 = vpop.f32.mrb[0].mxu0
    %731 = vmatprep.mubr.f32.mxu0 0.0
    %732 = vmatmul.mubr.f32.gmra.mrb[0].mxu0 %v643
    %v733 = vpop.f32.mrb[0].mxu0
    %v734 = vadd.f32 %v661, %v733
    %v735 = vpop.f32.mrb[0].mxu0
    %736 = vdwg.mxu0
    %v737 = vmax.f32 %v729, 0.0
    %v738 = vmax.f32 %v734, 0.0
    %739 = vst [vmem:[#allocation7] sm:$0xff] %v737
    %740 = vst [vmem:[#allocation7 + $0x8] sm:$0xff] %v738
    // Predicated region
    $region18: #{tpu_custom_call.1} parent=1 // pred_check
      _
    $region19: #{tpu_custom_call.1} parent=1 // pred_check_branch
      %742 = sbr.rel (0) target = $region21
    $region20: #{tpu_custom_call.1} parent=1 // pred_region
      %s744 = ssub.s32 256, 256
      %745 = vsyncadd [#allocation4], %s744
      %s746 = sshll.u32 [#allocation7], 4
      %s747 = int_to_ptr.vmem [resolvable:$true] %s746
      %752 = dma.vmem_to_hbm [thread:$0]  %s747, 256, %s2, [#allocation4], 128, 128, 8
    $region21: #{tpu_custom_call.1} parent=1 // pred_fallthru
      _
    // Predicated region
    $region22: #{tpu_custom_call.1} parent=1 // pred_check
      _
    $region23: #{tpu_custom_call.1} parent=1 // pred_check_branch
      %754 = sbr.rel (0) target = $region25
    $region24: #{tpu_custom_call.1} parent=1 // pred_region
      %755 = dma.done [#allocation4], 256
    $region25: #{tpu_custom_call.1} parent=1 // pred_fallthru
      _
    %756 = vsyncpa [#allocation3], 1
    %757 = vsyncpa [#allocation6], 1
    %758 = vsyncpa [#allocation4], 1

</llo_original>
